<compile_context>
chip_gen: v7x
topology: tpu7x:2x2x1
jax: 0.10.0
libtpu: 0.0.40
codegen_flags: <defaults>
</compile_context>

<pallas_src>
import numpy as np
import jax
import jax.numpy as jnp
import jax.scipy.linalg as jsl
from jax.experimental import pallas as pl
from jax.experimental.pallas import tpu as pltpu


# ----------------------------------------------------------------------------
# Host-side parameter / buffer construction (mirrors LMUFFT.__init__)
# ----------------------------------------------------------------------------
def state_space_matrices(memory_size, theta):
    """Continuous LMU matrices, discretized with ZOH (cont2discrete, dt=1)."""
    Q = np.arange(memory_size, dtype=np.float64).reshape(-1, 1)
    R = (2 * Q + 1) / theta
    i, j = np.meshgrid(Q, Q, indexing="ij")
    A = R * np.where(i < j, -1.0, (-1.0) ** (i - j + 1))
    B = R * (-1.0) ** Q
    M = memory_size
    EM = np.zeros((M + 1, M + 1), dtype=np.float64)
    EM[:M, :M] = A
    EM[:M, M:] = B
    EMd = np.asarray(jsl.expm(jnp.asarray(EM, dtype=jnp.float32)))
    Ad = EMd[:M, :M].astype(np.float32)
    Bd = EMd[:M, M:].astype(np.float32)
    return Ad, Bd


def impulse(Ad, Bd, seq_len):
    """H[:, t] = A^t B  (Equation 23 of the paper)."""
    M = Ad.shape[0]
    H = np.zeros((M, seq_len), dtype=np.float32)
    A_i = np.eye(M, dtype=np.float32)
    for t in range(seq_len):
        H[:, t:t + 1] = A_i @ Bd
        A_i = Ad @ A_i
    return H


def prepare_lmufft_params(wu, bu, wh, bh, H):
    """Weight-only precompute: fold the impulse response H into the memory half
    of W_h:  G0[j, o] = sum_k H[k, j] * W_h[o, k]   (only O(S*HID) bytes).
    The module's rfft/irfft memory update then becomes
        hm[t, :] = sum_{s<=t} u[s] * G0[t - s, :]  =  Toeplitz(u) @ G0,
    with the Toeplitz of u built in VMEM inside the kernel (no S^2 weights)."""
    wu = np.asarray(wu, np.float32)            # [1, I]
    bu = np.asarray(bu, np.float32)            # [1]
    wh = np.asarray(wh, np.float32)            # [HID, M + I]
    bh = np.asarray(bh, np.float32)            # [HID]
    H = np.asarray(H, np.float32)              # [M, S]
    M, S = H.shape
    HID = wh.shape[0]
    I = wh.shape[1] - M
    whm = wh[:, :M]                            # memory part of W_h  [HID, M]
    whx = wh[:, M:]                            # input  part of W_h  [HID, I]

    G0 = H.T @ whm.T                           # [S, HID]
    Sp = ((S + 127) // 128) * 128              # lane-aligned contraction dim
    G0p = np.zeros((Sp, HID), np.float32)      # zero-padded G0 (rows >= S unused)
    G0p[:S] = G0
    G0r = np.ascontiguousarray(G0[::-1])       # reversed G0, for the h_n fast path

    # Unit right-shift matrix used inside the kernel to build the Toeplitz rows
    # (shift-by-one as a tiny MXU matmul; avoids cross-lane rotate/concat).
    SH = np.zeros((Sp, Sp), np.float32)
    SH[np.arange(Sp - 1), np.arange(1, Sp)] = 1.0

    return dict(
        wu=jnp.asarray(wu.reshape(1, I), jnp.float32),
        bu=jnp.asarray(bu.reshape(1, 1), jnp.float32),
        g0p=jnp.asarray(G0p),
        g0r=jnp.asarray(G0r),
        whxT=jnp.asarray(np.ascontiguousarray(whx.T), jnp.float32),   # [I, HID]
        bh=jnp.asarray(bh.reshape(1, HID), jnp.float32),
        shift1=jnp.asarray(SH),
        seq_len=S, seq_pad=Sp, hidden_size=HID, input_size=I, memory_size=M,
    )


# ----------------------------------------------------------------------------
# Kernel 1: full hidden-state sequence h  (one batch element per grid step)
# ----------------------------------------------------------------------------
def _lmufft_h_kernel(wu_ref, bu_ref, x_ref, g0p_ref, whx_ref, bh_ref, sh_ref,
                     h_ref, tp_ref, u_ref):
    # wu_ref : [1, I]    SMEM  W_u weight            bu_ref: [1, 1] SMEM bias
    # x_ref  : [S, I]    VMEM  one batch element of the input
    # g0p_ref: [Sp, HID] VMEM  G0 zero-padded to Sp rows (lane-aligned K dim)
    # whx_ref: [I, HID]  VMEM  input part of W_h (transposed)
    # bh_ref : [1, HID]  VMEM  W_h bias
    # sh_ref : [Sp, Sp]  VMEM  unit right-shift matrix
    # h_ref  : [S, HID]  out   hidden states for this batch element
    # tp_ref : [S, Sp]   VMEM scratch: causal Toeplitz of u
    # u_ref  : [S, 1]    VMEM scratch: u = relu(W_u x + b_u)
    S, I = x_ref.shape
    Sp = g0p_ref.shape[0]

    # ---- u = relu(W_u x + b_u): I(=3)-term VPU multiply-add, dense W_u ----
    u = jnp.zeros((S, 1), jnp.float32) + bu_ref[0, 0]
    for i in range(I):                                   # static unroll, I == 3
        u = u + wu_ref[0, i] * x_ref[:, i:i + 1]
    u = jnp.maximum(u, 0.0)                              # [S, 1]
    u_ref[...] = u

    # ---- causal Toeplitz of u in VMEM: T[t, s] = u[t-s] for s <= t, else 0 --
    # Row recurrence: row_t = shift_right_by_one(row_{t-1}) + u[t] * e0.
    # The shift-by-one uses the precomputed unit-shift matrix on the MXU;
    # u[t] comes from a dynamic sublane read of the u scratch.
    lane0 = jax.lax.broadcasted_iota(jnp.int32, (1, Sp), 1) == 0
    sh = sh_ref[...]

    def fill_row(t, prev):
        u_t = u_ref[pl.ds(t, 1), :]                                    # [1, 1]
        row = jnp.dot(prev, sh, preferred_element_type=jnp.float32)    # shift >>1
        row = row + jnp.where(lane0, u_t, 0.0)
        tp_ref[pl.ds(t, 1), :] = row
        return row

    jax.lax.fori_loop(0, S, fill_row, jnp.zeros((1, Sp), jnp.float32))

    # ---- memory contribution on the MXU: [S, Sp] @ [Sp, HID], M-dim = S ----
    hm = jnp.dot(tp_ref[...], g0p_ref[...], preferred_element_type=jnp.float32)

    # ---- direct-input contribution of W_h (dense, I-term broadcast MAC) ----
    hx = x_ref[:, 0:1] * whx_ref[0:1, :]
    for i in range(1, I):
        hx = hx + x_ref[:, i:i + 1] * whx_ref[i:i + 1, :]

    h_ref[...] = jnp.maximum(hm + hx + bh_ref[...], 0.0)


def lmufft_forward(x, params):
    """x: [B, S, I] float32 -> (h [B, S, HID], h_n [B, HID])."""
    B, S, I = x.shape
    assert S == params["seq_len"] and I == params["input_size"]
    HID = params["hidden_size"]
    Sp = params["seq_pad"]

    flops = 2 * B * (S * Sp * HID + S * Sp * Sp + S * I * HID + S * I)
    bytes_accessed = 4 * (B * S * I + Sp * HID + I * HID + HID + Sp * Sp
                          + B * S * HID)

    h = pl.pallas_call(
        _lmufft_h_kernel,
        out_shape=jax.ShapeDtypeStruct((B, S, HID), jnp.float32),
        grid=(B,),
        in_specs=[
            pl.BlockSpec(memory_space=pltpu.MemorySpace.SMEM),       # W_u
            pl.BlockSpec(memory_space=pltpu.MemorySpace.SMEM),       # b_u
            pl.BlockSpec((None, S, I), lambda b: (b, 0, 0)),         # x (per batch)
            # Resident O(S*HID)-sized weights (constant index maps).
            # TODO(synk): pipeline_mode=pl.Buffered(1) at production sizes.
            pl.BlockSpec((Sp, HID), lambda b: (0, 0)),               # G0 (padded)
            pl.BlockSpec((I, HID), lambda b: (0, 0)),                # whx^T
            pl.BlockSpec((1, HID), lambda b: (0, 0)),                # b_h
            pl.BlockSpec((Sp, Sp), lambda b: (0, 0)),                # unit shift
        ],
        out_specs=pl.BlockSpec((None, S, HID), lambda b: (b, 0, 0)),
        scratch_shapes=[pltpu.VMEM((S, Sp), jnp.float32),
                        pltpu.VMEM((S, 1), jnp.float32)],
        compiler_params=pltpu.CompilerParams(
            dimension_semantics=("parallel",)),
        cost_estimate=pl.CostEstimate(
            flops=flops, transcendentals=0, bytes_accessed=bytes_accessed),
    )(params["wu"], params["bu"], x, params["g0p"], params["whxT"],
      params["bh"], params["shift1"])

    h_n = h[:, -1, :]                  # sliced in the wrapper (cheap XLA slice)
    return h, h_n


# ----------------------------------------------------------------------------
# Kernel 2: h_n-only fast path for the Model head (no [B, S, HID] writeback)
# ----------------------------------------------------------------------------
def _lmufft_hn_kernel(wu_ref, bu_ref, xt_ref, g0r_ref, whx_ref, bh_ref, hn_ref):
    # xt_ref : [I, S]    one batch element, time on the lane axis
    # g0r_ref: [S, HID]  G0 reversed in time (host precomputed)
    # hn_ref : [1, HID]  h_n = relu(u @ flip(G0) + x[S-1] @ whx^T + b_h)
    I, S = xt_ref.shape

    u = jnp.zeros((1, S), jnp.float32) + bu_ref[0, 0]
    for i in range(I):
        u = u + wu_ref[0, i] * xt_ref[i:i + 1, :]
    u = jnp.maximum(u, 0.0)                                           # [1, S]

    hm = jnp.dot(u, g0r_ref[...], preferred_element_type=jnp.float32)  # [1, HID]

    hx = xt_ref[0:1, S - 1:S] * whx_ref[0:1, :]
    for i in range(1, I):
        hx = hx + xt_ref[i:i + 1, S - 1:S] * whx_ref[i:i + 1, :]

    hn_ref[...] = jnp.maximum(hm + hx + bh_ref[...], 0.0)


def lmufft_last_hidden(x, params):
    """Fast path (review item): only h_n, skipping the full h computation."""
    B, S, I = x.shape
    HID = params["hidden_size"]
    xt = jnp.transpose(x, (0, 2, 1))                                  # [B, I, S]

    hn = pl.pallas_call(
        _lmufft_hn_kernel,
        out_shape=jax.ShapeDtypeStruct((B, 1, HID), jnp.float32),
        grid=(B,),
        in_specs=[
            pl.BlockSpec(memory_space=pltpu.MemorySpace.SMEM),
            pl.BlockSpec(memory_space=pltpu.MemorySpace.SMEM),
            pl.BlockSpec((None, I, S), lambda b: (b, 0, 0)),
            pl.BlockSpec((S, HID), lambda b: (0, 0)),
            pl.BlockSpec((I, HID), lambda b: (0, 0)),
            pl.BlockSpec((1, HID), lambda b: (0, 0)),
        ],
        out_specs=pl.BlockSpec((None, 1, HID), lambda b: (b, 0, 0)),
        compiler_params=pltpu.CompilerParams(
            dimension_semantics=("parallel",)),
    )(params["wu"], params["bu"], xt, params["g0r"], params["whxT"],
      params["bh"])
    return hn[:, 0, :]


def model_forward(x, params, wo, bo):
    """Model.forward: LMUFFT -> dropout (identity at inference) -> linear ->
    sigmoid, using the h_n-only fast path (never materializes h)."""
    h_n = lmufft_last_hidden(x, params)
    # TODO(synk): training-mode dropout (p=0.2) not implemented.
    return jax.nn.sigmoid(jnp.dot(h_n, wo.T) + bo)                    # [B, OUT]


# ----------------------------------------------------------------------------
# Pure-JAX reference mirroring the PyTorch forward (uses the real FFT)
# ----------------------------------------------------------------------------
def lmufft_reference(x, wu, bu, wh, bh, H):
    B, S, I = x.shape
    hi = jax.lax.Precision.HIGHEST
    u = jax.nn.relu(jnp.einsum("bsi,oi->bso", x, wu, precision=hi) + bu)   # [B,S,1]
    fft_in = jnp.transpose(u, (0, 2, 1))                                    # [B,1,S]
    fft_H = jnp.fft.rfft(H, n=2 * S, axis=-1)                               # [M,S+1]
    fft_u = jnp.fft.rfft(fft_in, n=2 * S, axis=-1)                          # [B,1,S+1]
    temp = fft_u * fft_H[None, :, :]
    m = jnp.fft.irfft(temp, n=2 * S, axis=-1)[:, :, :S]                     # [B,M,S]
    m = jnp.transpose(m, (0, 2, 1))                                         # [B,S,M]
    inp_h = jnp.concatenate([m, x], axis=-1)
    h = jax.nn.relu(jnp.einsum("bsf,of->bso", inp_h, wh, precision=hi) + bh)
    return h, h[:, -1, :]


if __name__ == "__main__":
    # Small shapes consistent with the module (input_size=3, mem=hidden=32)
    B, S, I, M, HID, THETA, OUT = 2, 16, 3, 32, 32, 64, 1

    Ad, Bd = state_space_matrices(M, THETA)
    H = impulse(Ad, Bd, S)                                # [M, S]

    key = jax.random.PRNGKey(0)
    kx, kwu, kbu, kwh, kbh, kwo, kbo = jax.random.split(key, 7)
    x = jax.random.normal(kx, (B, S, I), dtype=jnp.float32)
    wu = jax.random.normal(kwu, (1, I), dtype=jnp.float32) * 0.5
    bu = jax.random.normal(kbu, (1,), dtype=jnp.float32) * 0.1
    wh = jax.random.normal(kwh, (HID, M + I), dtype=jnp.float32) / np.sqrt(M + I)
    bh = jax.random.normal(kbh, (HID,), dtype=jnp.float32) * 0.1
    wo = jax.random.normal(kwo, (OUT, HID), dtype=jnp.float32) / np.sqrt(HID)
    bo = jax.random.normal(kbo, (OUT,), dtype=jnp.float32) * 0.1

    params = prepare_lmufft_params(wu, bu, wh, bh, H)

    h, h_n = lmufft_forward(x, params)
    h_n_fast = lmufft_last_hidden(x, params)
    out = model_forward(x, params, wo, bo)
    jax.block_until_ready((h, h_n, h_n_fast, out))

    h_ref, h_n_ref = lmufft_reference(x, wu, bu, wh, bh, jnp.asarray(H))
    out_ref = jax.nn.sigmoid(jnp.dot(h_n_ref, wo.T) + bo)

    assert h.shape == (B, S, HID) and h_n.shape == (B, HID)
    assert h_n_fast.shape == (B, HID) and out.shape == (B, OUT)
    np.testing.assert_allclose(np.asarray(h), np.asarray(h_ref), rtol=2e-2, atol=2e-2)
    np.testing.assert_allclose(np.asarray(h_n), np.asarray(h_n_ref), rtol=2e-2, atol=2e-2)
    np.testing.assert_allclose(np.asarray(h_n_fast), np.asarray(h_n_ref), rtol=2e-2, atol=2e-2)
    np.testing.assert_allclose(np.asarray(out), np.asarray(out_ref), rtol=2e-2, atol=2e-2)
    print("KERNEL_OK")
</pallas_src>

<mosaic_0001>
module attributes {stable_mosaic.version = 11 : i64} {
  func.func @_lmufft_h_kernel(%arg0: i32, %arg1: memref<1x3xf32, #tpu.memory_space<smem>>, %arg2: memref<1x1xf32, #tpu.memory_space<smem>>, %arg3: memref<1x16x3xf32, #tpu.memory_space<vmem>>, %arg4: memref<128x32xf32, #tpu.memory_space<vmem>>, %arg5: memref<3x32xf32, #tpu.memory_space<vmem>>, %arg6: memref<1x32xf32, #tpu.memory_space<vmem>>, %arg7: memref<128x128xf32, #tpu.memory_space<vmem>>, %arg8: memref<1x16x32xf32, #tpu.memory_space<vmem>>, %arg9: memref<16x128xf32, #tpu.memory_space<vmem>>, %arg10: memref<16x1xf32, #tpu.memory_space<vmem>>) attributes {dimension_semantics = [#tpu.dimension_semantics<parallel>], iteration_bounds = array<i64: 2>, scalar_prefetch = 0 : i64, scratch_operands = 2 : i64, tpu.core_type = #tpu.core_type<tc>, window_params = [{transform_indices = @transform_0, window_bounds = array<i64: 1, 3>}, {transform_indices = @transform_1, window_bounds = array<i64: 1, 1>}, {transform_indices = @transform_2, window_bounds = array<i64: 1, 16, 3>}, {pipeline_mode = #tpu.pipeline_mode<synchronous>, transform_indices = @transform_3, window_bounds = array<i64: 128, 32>}, {pipeline_mode = #tpu.pipeline_mode<synchronous>, transform_indices = @transform_4, window_bounds = array<i64: 3, 32>}, {pipeline_mode = #tpu.pipeline_mode<synchronous>, transform_indices = @transform_5, window_bounds = array<i64: 1, 32>}, {pipeline_mode = #tpu.pipeline_mode<synchronous>, transform_indices = @transform_6, window_bounds = array<i64: 128, 128>}, {transform_indices = @transform_7, window_bounds = array<i64: 1, 16, 32>}]} {
    %cst = arith.constant 0.000000e+00 : f32
    %0 = vector.broadcast %cst : f32 to vector<16x1xf32>
    %c0 = arith.constant 0 : index
    %c0_0 = arith.constant 0 : index
    %1 = memref.load %arg2[%c0, %c0_0] : memref<1x1xf32, #tpu.memory_space<smem>>
    %2 = vector.broadcast %1 : f32 to vector<16x1xf32>
    %3 = arith.addf %0, %2 : vector<16x1xf32>
    %c0_1 = arith.constant 0 : index
    %c0_2 = arith.constant 0 : index
    %4 = memref.load %arg1[%c0_1, %c0_2] : memref<1x3xf32, #tpu.memory_space<smem>>
    %c0_3 = arith.constant 0 : index
    %c0_4 = arith.constant 0 : index
    %c0_5 = arith.constant 0 : index
    %5 = vector.load %arg3[%c0_3, %c0_4, %c0_5] : memref<1x16x3xf32, #tpu.memory_space<vmem>>, vector<1x16x1xf32>
    %6 = vector.shape_cast %5 : vector<1x16x1xf32> to vector<16x1xf32>
    %7 = vector.broadcast %4 : f32 to vector<16x1xf32>
    %8 = arith.mulf %7, %6 : vector<16x1xf32>
    %9 = arith.addf %3, %8 : vector<16x1xf32>
    %c0_6 = arith.constant 0 : index
    %c1 = arith.constant 1 : index
    %10 = memref.load %arg1[%c0_6, %c1] : memref<1x3xf32, #tpu.memory_space<smem>>
    %c0_7 = arith.constant 0 : index
    %c0_8 = arith.constant 0 : index
    %c1_9 = arith.constant 1 : index
    %11 = vector.load %arg3[%c0_7, %c0_8, %c1_9] : memref<1x16x3xf32, #tpu.memory_space<vmem>>, vector<1x16x1xf32>
    %12 = vector.shape_cast %11 : vector<1x16x1xf32> to vector<16x1xf32>
    %13 = vector.broadcast %10 : f32 to vector<16x1xf32>
    %14 = arith.mulf %13, %12 : vector<16x1xf32>
    %15 = arith.addf %9, %14 : vector<16x1xf32>
    %c0_10 = arith.constant 0 : index
    %c2 = arith.constant 2 : index
    %16 = memref.load %arg1[%c0_10, %c2] : memref<1x3xf32, #tpu.memory_space<smem>>
    %c0_11 = arith.constant 0 : index
    %c0_12 = arith.constant 0 : index
    %c2_13 = arith.constant 2 : index
    %17 = vector.load %arg3[%c0_11, %c0_12, %c2_13] : memref<1x16x3xf32, #tpu.memory_space<vmem>>, vector<1x16x1xf32>
    %18 = vector.shape_cast %17 : vector<1x16x1xf32> to vector<16x1xf32>
    %19 = vector.broadcast %16 : f32 to vector<16x1xf32>
    %20 = arith.mulf %19, %18 : vector<16x1xf32>
    %21 = arith.addf %15, %20 : vector<16x1xf32>
    %cst_14 = arith.constant 0.000000e+00 : f32
    %22 = vector.broadcast %cst_14 : f32 to vector<16x1xf32>
    %23 = arith.maximumf %21, %22 : vector<16x1xf32>
    %c0_15 = arith.constant 0 : index
    %c0_16 = arith.constant 0 : index
    %24 = vector.load %arg10[%c0_15, %c0_16] : memref<16x1xf32, #tpu.memory_space<vmem>>, vector<16x1xf32>
    tpu.vector_store %arg10[%c0_15, %c0_16], %23 {strides = array<i32>} : memref<16x1xf32, #tpu.memory_space<vmem>>, vector<16x1xf32>,
    %25 = tpu.iota {dimensions = array<i32: 1>} : vector<1x128xi32>
    %c0_i32 = arith.constant 0 : i32
    %26 = vector.broadcast %c0_i32 : i32 to vector<1x128xi32>
    %27 = arith.cmpi eq, %25, %26 : vector<1x128xi32>
    %c0_17 = arith.constant 0 : index
    %c0_18 = arith.constant 0 : index
    %28 = vector.load %arg7[%c0_17, %c0_18] : memref<128x128xf32, #tpu.memory_space<vmem>>, vector<128x128xf32>
    %cst_19 = arith.constant 0.000000e+00 : f32
    %29 = vector.broadcast %cst_19 : f32 to vector<1x128xf32>
    %c0_i32_20 = arith.constant 0 : i32
    %c16_i32 = arith.constant 16 : i32
    %30 = arith.addi %c0_i32_20, %c16_i32 : i32
    %c1_i32 = arith.constant 1 : i32
    %31 = scf.for %arg11 = %c0_i32_20 to %30 step %c1_i32 iter_args(%arg12 = %29) -> (vector<1x128xf32>)  : i32 {
      %64 = arith.index_cast %arg11 : i32 to index
      %c0_48 = arith.constant 0 : index
      %65 = vector.load %arg10[%64, %c0_48] : memref<16x1xf32, #tpu.memory_space<vmem>>, vector<1x1xf32>
      %cst_49 = arith.constant dense<0.000000e+00> : vector<1x128xf32>
      %66 = tpu.matmul %arg12, %28, %cst_49 {dimension_numbers = #tpu.dot_dimension_numbers<[1], [0], [0], [1], [0, 0, 1, 1], [], []>} : vector<1x128xf32>, vector<128x128xf32>, vector<1x128xf32> -> vector<1x128xf32>
      %cst_50 = arith.constant 0.000000e+00 : f32
      %67 = vector.shape_cast %65 : vector<1x1xf32> to vector<1x1xf32>
      %68 = vector.broadcast %67 : vector<1x1xf32> to vector<1x128xf32>
      %69 = vector.broadcast %cst_50 : f32 to vector<1x128xf32>
      %70 = arith.select %27, %68, %69 : vector<1x128xi1>, vector<1x128xf32>
      %71 = arith.addf %66, %70 : vector<1x128xf32>
      %72 = arith.index_cast %arg11 : i32 to index
      %c0_51 = arith.constant 0 : index
      %73 = vector.load %arg9[%72, %c0_51] : memref<16x128xf32, #tpu.memory_space<vmem>>, vector<1x128xf32>
      tpu.vector_store %arg9[%72, %c0_51], %71 {strides = array<i32>} : memref<16x128xf32, #tpu.memory_space<vmem>>, vector<1x128xf32>,
      scf.yield %71 : vector<1x128xf32>
    }
    %c16_i32_21 = arith.constant 16 : i32
    %c0_22 = arith.constant 0 : index
    %c0_23 = arith.constant 0 : index
    %32 = vector.load %arg9[%c0_22, %c0_23] : memref<16x128xf32, #tpu.memory_space<vmem>>, vector<16x128xf32>
    %c0_24 = arith.constant 0 : index
    %c0_25 = arith.constant 0 : index
    %33 = vector.load %arg4[%c0_24, %c0_25] : memref<128x32xf32, #tpu.memory_space<vmem>>, vector<128x32xf32>
    %cst_26 = arith.constant dense<0.000000e+00> : vector<16x32xf32>
    %34 = tpu.matmul %32, %33, %cst_26 {dimension_numbers = #tpu.dot_dimension_numbers<[1], [0], [0], [1], [0, 0, 1, 1], [], []>} : vector<16x128xf32>, vector<128x32xf32>, vector<16x32xf32> -> vector<16x32xf32>
    %c0_27 = arith.constant 0 : index
    %c0_28 = arith.constant 0 : index
    %c0_29 = arith.constant 0 : index
    %35 = vector.load %arg3[%c0_27, %c0_28, %c0_29] : memref<1x16x3xf32, #tpu.memory_space<vmem>>, vector<1x16x1xf32>
    %36 = vector.shape_cast %35 : vector<1x16x1xf32> to vector<16x1xf32>
    %c0_30 = arith.constant 0 : index
    %c0_31 = arith.constant 0 : index
    %37 = vector.load %arg5[%c0_30, %c0_31] : memref<3x32xf32, #tpu.memory_space<vmem>>, vector<1x32xf32>
    %38 = vector.broadcast %36 : vector<16x1xf32> to vector<16x32xf32>
    %39 = vector.broadcast %37 : vector<1x32xf32> to vector<16x32xf32>
    %40 = arith.mulf %38, %39 : vector<16x32xf32>
    %c0_32 = arith.constant 0 : index
    %c0_33 = arith.constant 0 : index
    %c1_34 = arith.constant 1 : index
    %41 = vector.load %arg3[%c0_32, %c0_33, %c1_34] : memref<1x16x3xf32, #tpu.memory_space<vmem>>, vector<1x16x1xf32>
    %42 = vector.shape_cast %41 : vector<1x16x1xf32> to vector<16x1xf32>
    %c1_35 = arith.constant 1 : index
    %c0_36 = arith.constant 0 : index
    %43 = vector.load %arg5[%c1_35, %c0_36] : memref<3x32xf32, #tpu.memory_space<vmem>>, vector<1x32xf32>
    %44 = vector.broadcast %42 : vector<16x1xf32> to vector<16x32xf32>
    %45 = vector.broadcast %43 : vector<1x32xf32> to vector<16x32xf32>
    %46 = arith.mulf %44, %45 : vector<16x32xf32>
    %47 = arith.addf %40, %46 : vector<16x32xf32>
    %c0_37 = arith.constant 0 : index
    %c0_38 = arith.constant 0 : index
    %c2_39 = arith.constant 2 : index
    %48 = vector.load %arg3[%c0_37, %c0_38, %c2_39] : memref<1x16x3xf32, #tpu.memory_space<vmem>>, vector<1x16x1xf32>
    %49 = vector.shape_cast %48 : vector<1x16x1xf32> to vector<16x1xf32>
    %c2_40 = arith.constant 2 : index
    %c0_41 = arith.constant 0 : index
    %50 = vector.load %arg5[%c2_40, %c0_41] : memref<3x32xf32, #tpu.memory_space<vmem>>, vector<1x32xf32>
    %51 = vector.broadcast %49 : vector<16x1xf32> to vector<16x32xf32>
    %52 = vector.broadcast %50 : vector<1x32xf32> to vector<16x32xf32>
    %53 = arith.mulf %51, %52 : vector<16x32xf32>
    %54 = arith.addf %47, %53 : vector<16x32xf32>
    %55 = arith.addf %34, %54 : vector<16x32xf32>
    %c0_42 = arith.constant 0 : index
    %c0_43 = arith.constant 0 : index
    %56 = vector.load %arg6[%c0_42, %c0_43] : memref<1x32xf32, #tpu.memory_space<vmem>>, vector<1x32xf32>
    %57 = vector.broadcast %56 : vector<1x32xf32> to vector<16x32xf32>
    %58 = arith.addf %55, %57 : vector<16x32xf32>
    %cst_44 = arith.constant 0.000000e+00 : f32
    %59 = vector.broadcast %cst_44 : f32 to vector<16x32xf32>
    %60 = arith.maximumf %58, %59 : vector<16x32xf32>
    %c0_45 = arith.constant 0 : index
    %c0_46 = arith.constant 0 : index
    %c0_47 = arith.constant 0 : index
    %61 = vector.load %arg8[%c0_45, %c0_46, %c0_47] : memref<1x16x32xf32, #tpu.memory_space<vmem>>, vector<1x16x32xf32>
    %62 = vector.shape_cast %61 : vector<1x16x32xf32> to vector<16x32xf32>
    %63 = vector.shape_cast %60 : vector<16x32xf32> to vector<1x16x32xf32>
    tpu.vector_store %arg8[%c0_45, %c0_46, %c0_47], %63 {strides = array<i32>} : memref<1x16x32xf32, #tpu.memory_space<vmem>>, vector<1x16x32xf32>,
    return
  }
  func.func @transform_0(%arg0: i32) -> (i32, i32) {
    %c0_i32 = arith.constant 0 : i32
    %c0_i32_0 = arith.constant 0 : i32
    %c0_i32_1 = arith.constant 0 : i32
    return %c0_i32, %c0_i32_0 : i32, i32
  }
  func.func @transform_1(%arg0: i32) -> (i32, i32) {
    %c0_i32 = arith.constant 0 : i32
    %c0_i32_0 = arith.constant 0 : i32
    %c0_i32_1 = arith.constant 0 : i32
    return %c0_i32, %c0_i32_0 : i32, i32
  }
  func.func @transform_2(%arg0: i32) -> (i32, i32, i32) {
    %c0_i32 = arith.constant 0 : i32
    %c0_i32_0 = arith.constant 0 : i32
    %c0_i32_1 = arith.constant 0 : i32
    return %arg0, %c0_i32, %c0_i32_0 : i32, i32, i32
  }
  func.func @transform_3(%arg0: i32) -> (i32, i32) {
    %c0_i32 = arith.constant 0 : i32
    %c0_i32_0 = arith.constant 0 : i32
    %c0_i32_1 = arith.constant 0 : i32
    return %c0_i32, %c0_i32_0 : i32, i32
  }
  func.func @transform_4(%arg0: i32) -> (i32, i32) {
    %c0_i32 = arith.constant 0 : i32
    %c0_i32_0 = arith.constant 0 : i32
    %c0_i32_1 = arith.constant 0 : i32
    return %c0_i32, %c0_i32_0 : i32, i32
  }
  func.func @transform_5(%arg0: i32) -> (i32, i32) {
    %c0_i32 = arith.constant 0 : i32
    %c0_i32_0 = arith.constant 0 : i32
    %c0_i32_1 = arith.constant 0 : i32
    return %c0_i32, %c0_i32_0 : i32, i32
  }
  func.func @transform_6(%arg0: i32) -> (i32, i32) {
    %c0_i32 = arith.constant 0 : i32
    %c0_i32_0 = arith.constant 0 : i32
    %c0_i32_1 = arith.constant 0 : i32
    return %c0_i32, %c0_i32_0 : i32, i32
  }
  func.func @transform_7(%arg0: i32) -> (i32, i32, i32) {
    %c0_i32 = arith.constant 0 : i32
    %c0_i32_0 = arith.constant 0 : i32
    %c0_i32_1 = arith.constant 0 : i32
    return %arg0, %c0_i32, %c0_i32_0 : i32, i32, i32
  }
}

</mosaic_0001>

<llo_original>
// kernel: tpu_custom_call.1
$region0: #{tpu_custom_call.1}
  #allocation0 [shape = 'u32[]', space=smem, size = 0x4, offset = 0x4, fixed_abs, tag = 'smem constant byte address 0x4 - core index']
  #allocation1 [shape = 'u32[144,128]{1,0:T(1,128)}', space=vmem, size = 0x12000, scoped, tag = 'internal scratch']
  #allocation2 [shape = 'f32[16,128]{1,0:T(8,128)}', space=vmem, size = 0x2000, scoped, tag = 'scratch operand']
  #allocation3 [shape = 'f32[16,1]{1,0:T(8,128)}', space=vmem, size = 0x2000, scoped, tag = 'scratch operand']
  #allocation4 [shape = 'f32[1,1]{1,0:T(1,128)S(6)}', space=smem, size = 0x200, scoped, tag = 'scoped memory for tpu_custom_call.1']
  %s0 = inlined_call_operand.vmem [shape: f32[1,3], index: 0, kind: input, shape index: {}]
  %s1 = inlined_call_operand.<no memory space> [shape: f32[1,1], index: 1, kind: input, shape index: {}]
  %s2 = inlined_call_operand.vmem [shape: f32[2,16,3], index: 2, kind: input, shape index: {}]
  %s3 = inlined_call_operand.vmem [shape: f32[128,32], index: 3, kind: input, shape index: {}]
  %s4 = inlined_call_operand.vmem [shape: f32[3,32], index: 4, kind: input, shape index: {}]
  %s5 = inlined_call_operand.vmem [shape: f32[1,32], index: 5, kind: input, shape index: {}]
  %s6 = inlined_call_operand.vmem [shape: f32[128,128], index: 6, kind: input, shape index: {}]
  %s7 = inlined_call_operand.hbm [shape: f32[2,16,32], index: 7, kind: output, shape index: {}]
  %s8 = sld [smem:[#allocation0]]
  $region72: #{tpu_custom_call.1} parent=0
    _
  %s10 = ssub.s32 1, %s8
  %s11 = scalar_select 0, %s10, %s8
  %12 = sst [smem:[#allocation4]] %s1
  $region1: #{tpu_custom_call.1} parent=0
    #allocation5 [shape = 'u8[512]{0}', space=smem, size = 0x200, scoped, tag = 'input window, operand 0, single buffered']
    #allocation6 [shape = 's32[2]{0}', space=sflag, size = 0x8, scoped, tag = 'scoped memory for tpu_custom_call.1']
    #allocation7 [shape = 's32[2]{0}', space=sflag, size = 0x8, scoped, tag = 'scoped memory for tpu_custom_call.1']
    #allocation8 [shape = 'u8[16384]{0}', space=vmem, size = 0x4000, scoped, tag = 'output window, operand 0']
    %13 = vsyncpa [#allocation7], 0
    %14 = vsyncpa [#allocation6], 0
    %s15 = scalar_lea.sflag [#allocation6], 1
    %16 = vsyncpa %s15, 0
    loop: start=0, step=1, limit=4
    $region2: #{tpu_custom_call.1} parent=1 // loop_pre_header
      _
    $region3: #{tpu_custom_call.1} parent=1 // loop_header
      %s18 = sphi 0, %s22
      %p19 = scmp.ge.s32.totalorder %s18, 4
      %s26 = sphi 0, %s26
      %s28 = sphi 0, %s26
      %s29 = sphi 0, %s28
      %s43 = sphi 0, %s29
      %s47 = sphi 0, %s47
      %s49 = sphi 0, %s47
      %s50 = sphi 0, %s49
      %s64 = sphi 0, %s50
      %s70 = sphi 0, %s72
      %s73 = sphi 0, %s70
      %s74 = sphi 0, %s73
      %s90 = sphi 0, %s74
      %s94 = sphi 0, %s94
      %s96 = sphi 0, %s94
      %s97 = sphi 0, %s96
      %s111 = sphi 0, %s97
      %s115 = sphi 0, %s115
      %s117 = sphi 0, %s115
      %s118 = sphi 0, %s117
      %s132 = sphi 0, %s118
      %s136 = sphi 0, %s136
      %s138 = sphi 0, %s136
      %s139 = sphi 0, %s138
      %s153 = sphi 0, %s139
      %s157 = sphi 0, %s157
      %s159 = sphi 0, %s157
      %s160 = sphi 0, %s159
      %s174 = sphi 0, %s160
      %s180 = sphi 0, %s182
      %s183 = sphi 0, %s180
      %s184 = sphi 0, %s183
      %s200 = sphi 0, %s184
    $region4: #{tpu_custom_call.1} parent=1 // loop_header_branch
      %21 = sbr.rel (%p19) target = $region8
    $region5: #{tpu_custom_call.1} parent=1 // loop_body
      %s23 = ssub.s32 %s18, 1
      %s24 = ssub.s32 %s18, 2
      %s25 = sadd.s32 %s18, 1
      %s27 = sadd.s32 %s26, 1
      %p30 = scmp.eq.s32.totalorder %s18, 1
      %p31 = scmp.ne.s32.totalorder %s26, %s28
      %p32 = scmp.eq.s32.totalorder %s18, 0
      %p33 = por %p31, %p32
      %p34 = scmp.ne.s32.totalorder %s26, %s28
      %p35 = scmp.eq.s32.totalorder %s23, 1
      %p36 = por %p34, %p35
      %p37 = scmp.ne.s32.totalorder %s28, %s29
      %p38 = scmp.eq.s32.totalorder %s23, 0
      %p39 = por %p37, %p38
      %p40 = scmp.ne.s32.totalorder %s28, %s29
      %p41 = scmp.eq.s32.totalorder %s24, 1
      %p42 = por %p40, %p41
      %p44 = scmp.ne.s32.totalorder %s29, %s43
      %p45 = scmp.eq.s32.totalorder %s24, 0
      %p46 = por %p44, %p45
      %s48 = sadd.s32 %s47, 1
      %p51 = scmp.eq.s32.totalorder %s18, 1
      %p52 = scmp.ne.s32.totalorder %s47, %s49
      %p53 = scmp.eq.s32.totalorder %s18, 0
      %p54 = por %p52, %p53
      %p55 = scmp.ne.s32.totalorder %s47, %s49
      %p56 = scmp.eq.s32.totalorder %s23, 1
      %p57 = por %p55, %p56
      %p58 = scmp.ne.s32.totalorder %s49, %s50
      %p59 = scmp.eq.s32.totalorder %s23, 0
      %p60 = por %p58, %p59
      %p61 = scmp.ne.s32.totalorder %s49, %s50
      %p62 = scmp.eq.s32.totalorder %s24, 1
      %p63 = por %p61, %p62
      %p65 = scmp.ne.s32.totalorder %s50, %s64
      %p66 = scmp.eq.s32.totalorder %s24, 0
      %p67 = por %p65, %p66
      %s68 = ssub.s32 %s18, %s25
      %p69 = scmp.eq.s32.totalorder %s68, 0
      %s71 = sadd.s32 %s70, 1
      %s72 = scalar_select %p69, %s70, %s71
      %p75 = pneg %p69
      %p76 = scmp.eq.s32.totalorder %s18, 1
      %p77 = por %p75, %p76
      %p78 = scmp.ne.s32.totalorder %s70, %s73
      %p79 = scmp.eq.s32.totalorder %s18, 0
      %p80 = por %p78, %p79
      %p81 = scmp.ne.s32.totalorder %s70, %s73
      %p82 = scmp.eq.s32.totalorder %s23, 1
      %p83 = por %p81, %p82
      %p84 = scmp.ne.s32.totalorder %s73, %s74
      %p85 = scmp.eq.s32.totalorder %s23, 0
      %p86 = por %p84, %p85
      %p87 = scmp.ne.s32.totalorder %s73, %s74
      %p88 = scmp.eq.s32.totalorder %s24, 1
      %p89 = por %p87, %p88
      %p91 = scmp.ne.s32.totalorder %s74, %s90
      %p92 = scmp.eq.s32.totalorder %s24, 0
      %p93 = por %p91, %p92
      %s95 = sadd.s32 %s94, 1
      %p98 = scmp.eq.s32.totalorder %s18, 1
      %p99 = scmp.ne.s32.totalorder %s94, %s96
      %p100 = scmp.eq.s32.totalorder %s18, 0
      %p101 = por %p99, %p100
      %p102 = scmp.ne.s32.totalorder %s94, %s96
      %p103 = scmp.eq.s32.totalorder %s23, 1
      %p104 = por %p102, %p103
      %p105 = scmp.ne.s32.totalorder %s96, %s97
      %p106 = scmp.eq.s32.totalorder %s23, 0
      %p107 = por %p105, %p106
      %p108 = scmp.ne.s32.totalorder %s96, %s97
      %p109 = scmp.eq.s32.totalorder %s24, 1
      %p110 = por %p108, %p109
      %p112 = scmp.ne.s32.totalorder %s97, %s111
      %p113 = scmp.eq.s32.totalorder %s24, 0
      %p114 = por %p112, %p113
      %s116 = sadd.s32 %s115, 1
      %p119 = scmp.eq.s32.totalorder %s18, 1
      %p120 = scmp.ne.s32.totalorder %s115, %s117
      %p121 = scmp.eq.s32.totalorder %s18, 0
      %p122 = por %p120, %p121
      %p123 = scmp.ne.s32.totalorder %s115, %s117
      %p124 = scmp.eq.s32.totalorder %s23, 1
      %p125 = por %p123, %p124
      %p126 = scmp.ne.s32.totalorder %s117, %s118
      %p127 = scmp.eq.s32.totalorder %s23, 0
      %p128 = por %p126, %p127
      %p129 = scmp.ne.s32.totalorder %s117, %s118
      %p130 = scmp.eq.s32.totalorder %s24, 1
      %p131 = por %p129, %p130
      %p133 = scmp.ne.s32.totalorder %s118, %s132
      %p134 = scmp.eq.s32.totalorder %s24, 0
      %p135 = por %p133, %p134
      %s137 = sadd.s32 %s136, 1
      %p140 = scmp.eq.s32.totalorder %s18, 1
      %p141 = scmp.ne.s32.totalorder %s136, %s138
      %p142 = scmp.eq.s32.totalorder %s18, 0
      %p143 = por %p141, %p142
      %p144 = scmp.ne.s32.totalorder %s136, %s138
      %p145 = scmp.eq.s32.totalorder %s23, 1
      %p146 = por %p144, %p145
      %p147 = scmp.ne.s32.totalorder %s138, %s139
      %p148 = scmp.eq.s32.totalorder %s23, 0
      %p149 = por %p147, %p148
      %p150 = scmp.ne.s32.totalorder %s138, %s139
      %p151 = scmp.eq.s32.totalorder %s24, 1
      %p152 = por %p150, %p151
      %p154 = scmp.ne.s32.totalorder %s139, %s153
      %p155 = scmp.eq.s32.totalorder %s24, 0
      %p156 = por %p154, %p155
      %s158 = sadd.s32 %s157, 1
      %p161 = scmp.eq.s32.totalorder %s18, 1
      %p162 = scmp.ne.s32.totalorder %s157, %s159
      %p163 = scmp.eq.s32.totalorder %s18, 0
      %p164 = por %p162, %p163
      %p165 = scmp.ne.s32.totalorder %s157, %s159
      %p166 = scmp.eq.s32.totalorder %s23, 1
      %p167 = por %p165, %p166
      %p168 = scmp.ne.s32.totalorder %s159, %s160
      %p169 = scmp.eq.s32.totalorder %s23, 0
      %p170 = por %p168, %p169
      %p171 = scmp.ne.s32.totalorder %s159, %s160
      %p172 = scmp.eq.s32.totalorder %s24, 1
      %p173 = por %p171, %p172
      %p175 = scmp.ne.s32.totalorder %s160, %s174
      %p176 = scmp.eq.s32.totalorder %s24, 0
      %p177 = por %p175, %p176
      %s178 = ssub.s32 %s18, %s25
      %p179 = scmp.eq.s32.totalorder %s178, 0
      %s181 = sadd.s32 %s180, 1
      %s182 = scalar_select %p179, %s180, %s181
      %p185 = pneg %p179
      %p186 = scmp.eq.s32.totalorder %s18, 1
      %p187 = por %p185, %p186
      %p188 = scmp.ne.s32.totalorder %s180, %s183
      %p189 = scmp.eq.s32.totalorder %s18, 0
      %p190 = por %p188, %p189
      %p191 = scmp.ne.s32.totalorder %s180, %s183
      %p192 = scmp.eq.s32.totalorder %s23, 1
      %p193 = por %p191, %p192
      %p194 = scmp.ne.s32.totalorder %s183, %s184
      %p195 = scmp.eq.s32.totalorder %s23, 0
      %p196 = por %p194, %p195
      %p197 = scmp.ne.s32.totalorder %s183, %s184
      %p198 = scmp.eq.s32.totalorder %s24, 1
      %p199 = por %p197, %p198
      %p201 = scmp.ne.s32.totalorder %s184, %s200
      %p202 = scmp.eq.s32.totalorder %s24, 0
      %p203 = por %p201, %p202
      %p204 = scmp.le.s32.totalorder 1, %s18
      %p205 = scmp.lt.s32.totalorder %s18, 3
      %p206 = pnand %p204, %p205
      %p207 = pneg %p206
      // Predicated region
      $region9: #{tpu_custom_call.1} parent=5 // pred_check
        _
      $region10: #{tpu_custom_call.1} parent=5 // pred_check_branch
        %209 = sbr.rel (%p206) target = $region12
      $region11: #{tpu_custom_call.1} parent=5 // pred_region
        %s210 = ssub.s32 %s18, 1
        // Predicated region
        $region13: #{tpu_custom_call.1} parent=11 // pred_check
          %p211 = pneg %p39
        $region14: #{tpu_custom_call.1} parent=11 // pred_check_branch
          %213 = sbr.rel (%p211) target = $region16
        $region15: #{tpu_custom_call.1} parent=11 // pred_region
          %s215 = ssub.s32 16, 16
          %216 = vsyncadd [#allocation7], %s215
          %s218 = sshll.u32 %s0, 4
          %s219 = int_to_ptr.vmem [resolvable:$true] %s218
          %221 = dma.vmem_to_smem %s219, 16, [#allocation5], [#allocation7]
        $region16: #{tpu_custom_call.1} parent=11 // pred_fallthru
          _
        // Predicated region
        $region17: #{tpu_custom_call.1} parent=11 // pred_check
          %p222 = pneg %p60
        $region18: #{tpu_custom_call.1} parent=11 // pred_check_branch
          %224 = sbr.rel (%p222) target = $region20
        $region19: #{tpu_custom_call.1} parent=11 // pred_region
          _
        $region20: #{tpu_custom_call.1} parent=11 // pred_fallthru
          _
        // Predicated region
        $region21: #{tpu_custom_call.1} parent=11 // pred_check
          %p225 = pneg %p107
        $region22: #{tpu_custom_call.1} parent=11 // pred_check_branch
          %227 = sbr.rel (%p225) target = $region24
        $region23: #{tpu_custom_call.1} parent=11 // pred_region
          _
        $region24: #{tpu_custom_call.1} parent=11 // pred_fallthru
          _
        // Predicated region
        $region25: #{tpu_custom_call.1} parent=11 // pred_check
          %p228 = pneg %p128
        $region26: #{tpu_custom_call.1} parent=11 // pred_check_branch
          %230 = sbr.rel (%p228) target = $region28
        $region27: #{tpu_custom_call.1} parent=11 // pred_region
          _
        $region28: #{tpu_custom_call.1} parent=11 // pred_fallthru
          _
        // Predicated region
        $region29: #{tpu_custom_call.1} parent=11 // pred_check
          %p231 = pneg %p149
        $region30: #{tpu_custom_call.1} parent=11 // pred_check_branch
          %233 = sbr.rel (%p231) target = $region32
        $region31: #{tpu_custom_call.1} parent=11 // pred_region
          _
        $region32: #{tpu_custom_call.1} parent=11 // pred_fallthru
          _
        // Predicated region
        $region33: #{tpu_custom_call.1} parent=11 // pred_check
          %p234 = pneg %p170
        $region34: #{tpu_custom_call.1} parent=11 // pred_check_branch
          %236 = sbr.rel (%p234) target = $region36
        $region35: #{tpu_custom_call.1} parent=11 // pred_region
          _
        $region36: #{tpu_custom_call.1} parent=11 // pred_fallthru
          _
      $region12: #{tpu_custom_call.1} parent=5 // pred_fallthru
        _
      %p237 = scmp.lt.s32.totalorder %s18, 2
      // Predicated region
      $region37: #{tpu_custom_call.1} parent=5 // pred_check
        %p238 = pneg %p237
      $region38: #{tpu_custom_call.1} parent=5 // pred_check_branch
        %240 = sbr.rel (%p238) target = $region40
      $region39: #{tpu_custom_call.1} parent=5 // pred_region
        // Predicated region
        $region41: #{tpu_custom_call.1} parent=39 // pred_check
          %p241 = pneg %p80
        $region42: #{tpu_custom_call.1} parent=39 // pred_check_branch
          %243 = sbr.rel (%p241) target = $region44
        $region43: #{tpu_custom_call.1} parent=39 // pred_region
          %p244 = scmp.lt.s32.totalorder %s18, 1
          %s245 = scalar_select %p244, %s18, 1
          %s246 = smul.addr %s245, 2
          %s247 = smul.addr %s246, 8
          %s248 = scalar_lea.vmem %s2, %s247
        $region44: #{tpu_custom_call.1} parent=39 // pred_fallthru
          _
      $region40: #{tpu_custom_call.1} parent=5 // pred_fallthru
        _
      %p249 = scmp.le.s32.totalorder 1, %s18
      %p250 = scmp.lt.s32.totalorder %s18, 3
      %p251 = pnand %p249, %p250
      %p252 = pneg %p251
      // Predicated region
      $region45: #{tpu_custom_call.1} parent=5 // pred_check
        _
      $region46: #{tpu_custom_call.1} parent=5 // pred_check_branch
        %254 = sbr.rel (%p251) target = $region48
      $region47: #{tpu_custom_call.1} parent=5 // pred_region
        %s255 = ssub.s32 %s18, 1
        // Predicated region
        $region49: #{tpu_custom_call.1} parent=47 // pred_check
          %p256 = pneg %p39
        $region50: #{tpu_custom_call.1} parent=47 // pred_check_branch
          %258 = sbr.rel (%p256) target = $region52
        $region51: #{tpu_custom_call.1} parent=47 // pred_region
          %259 = dma.done [#allocation7], 16
        $region52: #{tpu_custom_call.1} parent=47 // pred_fallthru
          _
        %260 = sfence
        %p261 = pneg %p39
        %p262 = pneg %p36
        %p263 = pneg %p60
        %p264 = pneg %p57
        %p265 = scmp.lt.s32.totalorder %s23, 1
        %s266 = scalar_select %p265, %s23, 1
        %s267 = smul.addr %s266, 2
        %s268 = smul.addr %s267, 8
        %s269 = scalar_lea.vmem %s2, %s268
        %p270 = pneg %p86
        %p271 = pneg %p83
        %p272 = pneg %p107
        %p273 = pneg %p104
        %p274 = pneg %p128
        %p275 = pneg %p125
        %p276 = pneg %p149
        %p277 = pneg %p146
        %p278 = pneg %p170
        %p279 = pneg %p167
        %p280 = pneg %p196
        %p281 = pneg %p193
        %s282 = sand.u32 %s183, 1
        %s283 = scalar_lea.sflag [#allocation6], %s282
        %s284 = sand.u32 %s183, 1
        %s285 = smul.addr %s284, 16
        %s286 = scalar_lea.vmem [#allocation8], %s285
        %p287 = scmp.lt.s32.totalorder %s23, 1
        %s288 = scalar_select %p287, %s23, 1
        %s289 = smul.addr %s288, 2
        %s290 = smul.addr %s289, 8
        %s291 = scalar_lea.vmem %s2, %s290
        %s292 = sld [smem:[#allocation4]]
        %v293 = vstv %s292
        %v294 = vadd.f32 %v293, 0.0
        %s295 = sld [smem:[#allocation5]]
        %v296 = vld [vmem:[%s291] sm:$0xff]
        %v297 = vld [vmem:[%s291 + $0x8] sm:$0xff]
        %v298 = vstv %s295
        %v299 = vmul.f32 %v298, %v296
        %v300 = vmul.f32 %v298, %v297
        %v301 = vadd.f32 %v294, %v299
        %v302 = vadd.f32 %v294, %v300
        %s303 = sld [smem:[#allocation5 + $0x1]]
        %v304 = vstv %s303
        %v305 = vmul.f32 %v304, %v296
        %v306 = vmul.f32 %v304, %v297
        %309 = vrot.lane.b32.xlu0 %v305, 127
        %v310 = vpop.permute.xlu0 %309
        %311 = vrot.lane.b32.xlu0 %v306, 127
        %v312 = vpop.permute.xlu0 %311
        %v315 = vadd.f32 %v301, %v310
        %v316 = vadd.f32 %v302, %v312
        %s317 = sld [smem:[#allocation5 + $0x2]]
        %v318 = vstv %s317
        %v319 = vmul.f32 %v318, %v296
        %v320 = vmul.f32 %v318, %v297
        %323 = vrot.lane.b32.xlu0 %v319, 126
        %v324 = vpop.permute.xlu0 %323
        %325 = vrot.lane.b32.xlu0 %v320, 126
        %v326 = vpop.permute.xlu0 %325
        %v329 = vadd.f32 %v315, %v324
        %v330 = vadd.f32 %v316, %v326
        %v331 = vmax.f32 %v329, 0.0
        %v332 = vmax.f32 %v330, 0.0
        %vm333 = vcmask 7168
        %334 = vst.msk [vmem:[#allocation3] sm:$0xff] %vm333, %v331
        %335 = vst.msk [vmem:[#allocation3 + $0x8] sm:$0xff] %vm333, %v332
        %v336 = vlaneseq
        %v337 = vand.u32 %v336, 127
        %vm338 = vcmp.eq.s32.totalorder %v337, 0
        %v339 = vld [vmem:[%s6] sm:$0xff]
        %v340 = vld [vmem:[%s6 + $0x8] sm:$0xff]
        %v341 = vld [vmem:[%s6 + $0x10] sm:$0xff]
        %v342 = vld [vmem:[%s6 + $0x18] sm:$0xff]
        %v343 = vld [vmem:[%s6 + $0x20] sm:$0xff]
        %v344 = vld [vmem:[%s6 + $0x28] sm:$0xff]
        %v345 = vld [vmem:[%s6 + $0x30] sm:$0xff]
        %v346 = vld [vmem:[%s6 + $0x38] sm:$0xff]
        %v347 = vld [vmem:[%s6 + $0x40] sm:$0xff]
        %v348 = vld [vmem:[%s6 + $0x48] sm:$0xff]
        %v349 = vld [vmem:[%s6 + $0x50] sm:$0xff]
        %v350 = vld [vmem:[%s6 + $0x58] sm:$0xff]
        %v351 = vld [vmem:[%s6 + $0x60] sm:$0xff]
        %v352 = vld [vmem:[%s6 + $0x68] sm:$0xff]
        %v353 = vld [vmem:[%s6 + $0x70] sm:$0xff]
        %v354 = vld [vmem:[%s6 + $0x78] sm:$0xff]
        loop: start=0, step=1, limit=16
        $region53: #{tpu_custom_call.1} parent=47 // loop_pre_header
          _
        $region54: #{tpu_custom_call.1} parent=47 // loop_header
          %s356 = sphi 0, %s360
          %p357 = scmp.ge.s32.totalorder %s356, 16
          %v361 = vphi 0.0, %v437
        $region55: #{tpu_custom_call.1} parent=47 // loop_header_branch
          %359 = sbr.rel (%p357) target = $region59
        $region56: #{tpu_custom_call.1} parent=47 // loop_body
          %s362 = scalar_lea.vmem [#allocation3], %s356
          %v363 = vld [vmem:[%s362] sm:$0x1]
          %365 = vset.pattern.permute.xlu0 0
          %366 = vperm.xlu0 %365, %v363
          %v367 = vpop.permute.xlu0 %366
          %v369 = vsel %vm338, %v367, 0.0
          %370 = vmatprep.subr.mxu0 0.0
          %371 = vmatpush1.msra.mxu0 %v339
          %372 = vmatprep.subr.mxu0 0.0
          %373 = vmatpush1.msra.mxu0 %v340
          %374 = vmatprep.subr.mxu0 0.0
          %375 = vmatpush1.msra.mxu0 %v341
          %376 = vmatprep.subr.mxu0 0.0
          %377 = vmatpush1.msra.mxu0 %v342
          %378 = vmatprep.subr.mxu0 0.0
          %379 = vmatpush1.msra.mxu0 %v343
          %380 = vmatprep.subr.mxu0 0.0
          %381 = vmatpush1.msra.mxu0 %v344
          %382 = vmatprep.subr.mxu0 0.0
          %383 = vmatpush1.msra.mxu0 %v345
          %384 = vmatprep.subr.mxu0 0.0
          %385 = vmatpush1.msra.mxu0 %v346
          %386 = vmatprep.subr.mxu0 0.0
          %387 = vmatpush1.msra.mxu0 %v347
          %388 = vmatprep.subr.mxu0 0.0
          %389 = vmatpush1.msra.mxu0 %v348
          %390 = vmatprep.subr.mxu0 0.0
          %391 = vmatpush1.msra.mxu0 %v349
          %392 = vmatprep.subr.mxu0 0.0
          %393 = vmatpush1.msra.mxu0 %v350
          %394 = vmatprep.subr.mxu0 0.0
          %395 = vmatpush1.msra.mxu0 %v351
          %396 = vmatprep.subr.mxu0 0.0
          %397 = vmatpush1.msra.mxu0 %v352
          %398 = vmatprep.subr.mxu0 0.0
          %399 = vmatpush1.msra.mxu0 %v353
          %400 = vmatprep.subr.mxu0 0.0
          %401 = vmatpush1.msra.mxu0 %v354
          %402 = vmatprep.subr.mxu0 0.0
          %403 = vmatpush1.msra.mxu0 0.0
          %404 = vmatprep.subr.mxu0 0.0
          %405 = vmatpush1.msra.mxu0 0.0
          %406 = vmatprep.subr.mxu0 0.0
          %407 = vmatpush1.msra.mxu0 0.0
          %408 = vmatprep.subr.mxu0 0.0
          %409 = vmatpush1.msra.mxu0 0.0
          %410 = vmatprep.subr.mxu0 0.0
          %411 = vmatpush1.msra.mxu0 0.0
          %412 = vmatprep.subr.mxu0 0.0
          %413 = vmatpush1.msra.mxu0 0.0
          %414 = vmatprep.subr.mxu0 0.0
          %415 = vmatpush1.msra.mxu0 0.0
          %416 = vmatprep.subr.mxu0 0.0
          %417 = vmatpush1.msra.mxu0 0.0
          %418 = vmatprep.subr.mxu0 0.0
          %419 = vmatpush1.msra.mxu0 0.0
          %420 = vmatprep.subr.mxu0 0.0
          %421 = vmatpush1.msra.mxu0 0.0
          %422 = vmatprep.subr.mxu0 0.0
          %423 = vmatpush1.msra.mxu0 0.0
          %424 = vmatprep.subr.mxu0 0.0
          %425 = vmatpush1.msra.mxu0 0.0
          %426 = vmatprep.subr.mxu0 0.0
          %427 = vmatpush1.msra.mxu0 0.0
          %428 = vmatprep.subr.mxu0 0.0
          %429 = vmatpush1.msra.mxu0 0.0
          %430 = vmatprep.subr.mxu0 0.0
          %431 = vmatpush1.msra.mxu0 0.0
          %432 = vmatprep.subr.mxu0 0.0
          %433 = vmatpush1.msra.mxu0 0.0
          %434 = vmatprep.mubr.f32.mxu0 0.0
          %435 = vmatmul.mubr.f32.gmra.mrb[0].mxu0 %v361
          %v436 = vpop.f32.mrb[0].mxu0
          %v437 = vadd.f32 %v369, %v436
          %v438 = vpop.f32.mrb[0].mxu0
          %439 = vdwg.mxu0
          %s440 = scalar_lea.vmem [#allocation2], %s356
          %441 = vst [vmem:[%s440] sm:$0x1] %v437
        $region57: #{tpu_custom_call.1} parent=47 // loop_footer
          %s360 = sadd.s32 1, %s356
        $region58: #{tpu_custom_call.1} parent=47 // loop_footer_branch
          %355 = sbr.rel target = $region54
        $region59: #{tpu_custom_call.1} parent=47 // loop_exit
          _
        %v442 = vld [vmem:[#allocation2] sm:$0xff]
        %v443 = vld [vmem:[#allocation2 + $0x8] sm:$0xff]
        %v444 = vld [vmem:[%s3] sm:$0xff]
        %v445 = vld [vmem:[%s3 + $0x8] sm:$0xff]
        %v446 = vld [vmem:[%s3 + $0x10] sm:$0xff]
        %v447 = vld [vmem:[%s3 + $0x18] sm:$0xff]
        %v448 = vld [vmem:[%s3 + $0x20] sm:$0xff]
        %v449 = vld [vmem:[%s3 + $0x28] sm:$0xff]
        %v450 = vld [vmem:[%s3 + $0x30] sm:$0xff]
        %v451 = vld [vmem:[%s3 + $0x38] sm:$0xff]
        %v452 = vld [vmem:[%s3 + $0x40] sm:$0xff]
        %v453 = vld [vmem:[%s3 + $0x48] sm:$0xff]
        %v454 = vld [vmem:[%s3 + $0x50] sm:$0xff]
        %v455 = vld [vmem:[%s3 + $0x58] sm:$0xff]
        %v456 = vld [vmem:[%s3 + $0x60] sm:$0xff]
        %v457 = vld [vmem:[%s3 + $0x68] sm:$0xff]
        %v458 = vld [vmem:[%s3 + $0x70] sm:$0xff]
        %v459 = vld [vmem:[%s3 + $0x78] sm:$0xff]
        %v460 = vld [vmem:[%s291] sm:$0xff]
        %v461 = vld [vmem:[%s291 + $0x8] sm:$0xff]
        %v462 = vld [vmem:[%s4] sm:$0x1]
        %464 = vset.pattern.permute.xlu0 0
        %465 = vperm.xlu0 %464, %v460
        %v466 = vpop.permute.xlu0 %465
        %469 = vset.pattern.permute.xlu0 0
        %470 = vperm.xlu0 %469, %v461
        %v471 = vpop.permute.xlu0 %470
        %v473 = vlaneseq
        %v474 = vshrl.u32 %v473, 7
        %v475 = vsub.s32 0, %v474
        %v476 = vrot.slane %v462, %v475
        %v477 = vmul.f32 %v466, %v476
        %v478 = vmul.f32 %v471, %v476
        %v479 = vld [vmem:[%s4 + $0x1] sm:$0x1]
        %480 = vset.pattern.permute.xlu0 1
        %481 = vperm.xlu0 %480, %v460
        %v482 = vpop.permute.xlu0 %481
        %484 = vset.pattern.permute.xlu0 1
        %485 = vperm.xlu0 %484, %v461
        %v486 = vpop.permute.xlu0 %485
        %v488 = vlaneseq
        %v489 = vshrl.u32 %v488, 7
        %v490 = vsub.s32 0, %v489
        %v491 = vrot.slane %v479, %v490
        %v492 = vmul.f32 %v482, %v491
        %v493 = vmul.f32 %v486, %v491
        %v494 = vadd.f32 %v477, %v492
        %v495 = vadd.f32 %v478, %v493
        %v496 = vld [vmem:[%s4 + $0x2] sm:$0x1]
        %497 = vset.pattern.permute.xlu0 2
        %498 = vperm.xlu0 %497, %v460
        %v499 = vpop.permute.xlu0 %498
        %501 = vset.pattern.permute.xlu0 2
        %502 = vperm.xlu0 %501, %v461
        %v503 = vpop.permute.xlu0 %502
        %v505 = vlaneseq
        %v506 = vshrl.u32 %v505, 7
        %v507 = vsub.s32 0, %v506
        %v508 = vrot.slane %v496, %v507
        %v509 = vmul.f32 %v499, %v508
        %v510 = vmul.f32 %v503, %v508
        %v511 = vadd.f32 %v494, %v509
        %v512 = vadd.f32 %v495, %v510
        %513 = vmatprep.subr.mxu0 0.0
        %514 = vmatpush1.msra.mxu0 %v444
        %515 = vmatprep.subr.mxu0 0.0
        %516 = vmatpush1.msra.mxu0 %v445
        %517 = vmatprep.subr.mxu0 0.0
        %518 = vmatpush1.msra.mxu0 %v446
        %519 = vmatprep.subr.mxu0 0.0
        %520 = vmatpush1.msra.mxu0 %v447
        %521 = vmatprep.subr.mxu0 0.0
        %522 = vmatpush1.msra.mxu0 %v448
        %523 = vmatprep.subr.mxu0 0.0
        %524 = vmatpush1.msra.mxu0 %v449
        %525 = vmatprep.subr.mxu0 0.0
        %526 = vmatpush1.msra.mxu0 %v450
        %527 = vmatprep.subr.mxu0 0.0
        %528 = vmatpush1.msra.mxu0 %v451
        %529 = vmatprep.subr.mxu0 0.0
        %530 = vmatpush1.msra.mxu0 %v452
        %531 = vmatprep.subr.mxu0 0.0
        %532 = vmatpush1.msra.mxu0 %v453
        %533 = vmatprep.subr.mxu0 0.0
        %534 = vmatpush1.msra.mxu0 %v454
        %535 = vmatprep.subr.mxu0 0.0
        %536 = vmatpush1.msra.mxu0 %v455
        %537 = vmatprep.subr.mxu0 0.0
        %538 = vmatpush1.msra.mxu0 %v456
        %539 = vmatprep.subr.mxu0 0.0
        %540 = vmatpush1.msra.mxu0 %v457
        %541 = vmatprep.subr.mxu0 0.0
        %542 = vmatpush1.msra.mxu0 %v458
        %543 = vmatprep.subr.mxu0 0.0
        %544 = vmatpush1.msra.mxu0 %v459
        %545 = vmatprep.subr.mxu0 0.0
        %546 = vmatpush1.msra.mxu0 0.0
        %547 = vmatprep.subr.mxu0 0.0
        %548 = vmatpush1.msra.mxu0 0.0
        %549 = vmatprep.subr.mxu0 0.0
        %550 = vmatpush1.msra.mxu0 0.0
        %551 = vmatprep.subr.mxu0 0.0
        %552 = vmatpush1.msra.mxu0 0.0
        %553 = vmatprep.subr.mxu0 0.0
        %554 = vmatpush1.msra.mxu0 0.0
        %555 = vmatprep.subr.mxu0 0.0
        %556 = vmatpush1.msra.mxu0 0.0
        %557 = vmatprep.subr.mxu0 0.0
        %558 = vmatpush1.msra.mxu0 0.0
        %559 = vmatprep.subr.mxu0 0.0
        %560 = vmatpush1.msra.mxu0 0.0
        %561 = vmatprep.subr.mxu0 0.0
        %562 = vmatpush1.msra.mxu0 0.0
        %563 = vmatprep.subr.mxu0 0.0
        %564 = vmatpush1.msra.mxu0 0.0
        %565 = vmatprep.subr.mxu0 0.0
        %566 = vmatpush1.msra.mxu0 0.0
        %567 = vmatprep.subr.mxu0 0.0
        %568 = vmatpush1.msra.mxu0 0.0
        %569 = vmatprep.subr.mxu0 0.0
        %570 = vmatpush1.msra.mxu0 0.0
        %571 = vmatprep.subr.mxu0 0.0
        %572 = vmatpush1.msra.mxu0 0.0
        %573 = vmatprep.subr.mxu0 0.0
        %574 = vmatpush1.msra.mxu0 0.0
        %575 = vmatprep.subr.mxu0 0.0
        %576 = vmatpush1.msra.mxu0 0.0
        %577 = vmatprep.mubr.f32.mxu0 0.0
        %578 = vmatmul.mubr.f32.gmra.mrb[0].mxu0 %v442
        %v579 = vpop.f32.mrb[0].mxu0
        %v580 = vadd.f32 %v511, %v579
        %v581 = vpop.f32.mrb[0].mxu0
        %582 = vmatprep.mubr.f32.mxu0 0.0
        %583 = vmatmul.mubr.f32.gmra.mrb[0].mxu0 %v443
        %v584 = vpop.f32.mrb[0].mxu0
        %v585 = vadd.f32 %v512, %v584
        %v586 = vpop.f32.mrb[0].mxu0
        %587 = vdwg.mxu0
        %v588 = vld [vmem:[%s5] sm:$0x1]
        %v590 = vlaneseq
        %v591 = vshrl.u32 %v590, 7
        %v592 = vsub.s32 0, %v591
        %v593 = vrot.slane %v588, %v592
        %v595 = vadd.f32 %v580, %v593
        %v596 = vadd.f32 %v585, %v593
        %v597 = vmax.f32 %v595, 0.0
        %v598 = vmax.f32 %v596, 0.0
        %vm599 = vcmask 261120
        %600 = vst.msk [vmem:[%s286] sm:$0xff] %vm599, %v597
        %601 = vst.msk [vmem:[%s286 + $0x8] sm:$0xff] %vm599, %v598
        %s602 = sand.u32 %s183, 1
        %s603 = scalar_lea.sflag [#allocation6], %s602
        %s604 = sand.u32 %s183, 1
        %s605 = smul.addr %s604, 16
        %s606 = scalar_lea.vmem [#allocation8], %s605
        // Predicated region
        $region60: #{tpu_custom_call.1} parent=47 // pred_check
          %p607 = pneg %p193
        $region61: #{tpu_custom_call.1} parent=47 // pred_check_branch
          %609 = sbr.rel (%p607) target = $region63
        $region62: #{tpu_custom_call.1} parent=47 // pred_region
          %s611 = ssub.s32 256, 256
          %612 = vsyncadd %s603, %s611
          %s613 = smul.addr %s23, 2
          %s614 = smul.addr %s613, 128
          %s615 = scalar_lea.hbm %s7, %s614
          %s616 = sshll.u32 %s606, 4
          %s617 = int_to_ptr.vmem [resolvable:$true] %s616
          %622 = dma.vmem_to_hbm [thread:$0]  %s617, 256, %s615, %s603, 128, 128, 8
        $region63: #{tpu_custom_call.1} parent=47 // pred_fallthru
          _
      $region48: #{tpu_custom_call.1} parent=5 // pred_fallthru
        _
      %p623 = scmp.le.s32.totalorder 2, %s18
      // Predicated region
      $region64: #{tpu_custom_call.1} parent=5 // pred_check
        %p624 = pneg %p623
      $region65: #{tpu_custom_call.1} parent=5 // pred_check_branch
        %626 = sbr.rel (%p624) target = $region67
      $region66: #{tpu_custom_call.1} parent=5 // pred_region
        %s627 = ssub.s32 %s18, 2
        // Predicated region
        $region68: #{tpu_custom_call.1} parent=66 // pred_check
          %p628 = pneg %p199
        $region69: #{tpu_custom_call.1} parent=66 // pred_check_branch
          %630 = sbr.rel (%p628) target = $region71
        $region70: #{tpu_custom_call.1} parent=66 // pred_region
          %s631 = sand.u32 %s184, 1
          %s632 = scalar_lea.sflag [#allocation6], %s631
          %s633 = sand.u32 %s184, 1
          %s634 = smul.addr %s633, 16
          %s635 = scalar_lea.vmem [#allocation8], %s634
          %636 = dma.done %s632, 256
        $region71: #{tpu_custom_call.1} parent=66 // pred_fallthru
          _
      $region67: #{tpu_custom_call.1} parent=5 // pred_fallthru
        _
    $region6: #{tpu_custom_call.1} parent=1 // loop_footer
      %s22 = sadd.s32 1, %s18
    $region7: #{tpu_custom_call.1} parent=1 // loop_footer_branch
      %17 = sbr.rel target = $region3
    $region8: #{tpu_custom_call.1} parent=1 // loop_exit
      _
    %637 = vsyncpa [#allocation6], 1
    %s638 = scalar_lea.sflag [#allocation6], 1
    %639 = vsyncpa %s638, 1
    %640 = vsyncpa [#allocation7], 1
    %s641 = scalar_lea.sflag [#allocation7], 1
    %642 = vsyncpa %s641, 1

</llo_original>
